<compile_context>
chip_gen: v6e
topology: v6e:2x2x1
jax: 0.10.0
libtpu: 0.0.40
codegen_flags: <defaults>
</compile_context>

<pallas_src>
import jax
import jax.numpy as jnp
from jax.experimental import pallas as pl
from jax.experimental.pallas import tpu as pltpu


def _make_outconv_kernel(cin, use_vpu):
    """Build the per-tile kernel: o = W @ x + b over a (Cin, TP) pixel tile."""
    if use_vpu:
        # Cin <= 8: an unrolled broadcast-FMA keeps the work on the VPU and
        # skips MXU operand relayout / result-FIFO pops (matters most on v5e).
        def kernel(w_ref, b_ref, x_ref, o_ref):
            x = x_ref[...].astype(jnp.float32)          # (Cin, TP)
            w = w_ref[...].astype(jnp.float32)          # (Cout, Cin)
            acc = w[:, 0:1] * x[0:1, :]                 # (Cout, TP)
            for ci in range(1, cin):
                acc = acc + w[:, ci:ci + 1] * x[ci:ci + 1, :]
            o_ref[...] = (acc + b_ref[...]).astype(o_ref.dtype)
    else:
        def kernel(w_ref, b_ref, x_ref, o_ref):
            acc = jnp.dot(w_ref[...], x_ref[...],
                          preferred_element_type=jnp.float32)
            o_ref[...] = (acc + b_ref[...]).astype(o_ref.dtype)
    return kernel


def _sublane(itemsize):
    # Sublane packing: f32 -> 8, bf16 -> 16, int8/fp8 -> 32.
    return 8 * max(1, 4 // itemsize)


def _pick_pixel_tile(P, N, Cin, Cout, itemsize):
    """Pick a lane-dense pixel tile size for the streaming 1x1 conv."""
    if P <= 128:
        return P  # full-extent block is always legal

    sub = _sublane(itemsize)
    pad = lambda c: -(-c // sub) * sub

    # Target ~2 MiB of HBM traffic per grid step: bytes/step = (Cin+Cout)*itemsize*tp.
    target_bytes = 2 << 20
    tp = max(128, (target_bytes // ((Cin + Cout) * itemsize)) // 128 * 128)

    # VMEM cap: double-buffered input + output tiles (channel dims sublane-padded).
    vmem_budget = 24 << 20
    per_px = 2 * (pad(Cin) + pad(Cout)) * itemsize
    tp = min(tp, max(128, (vmem_budget // per_px) // 128 * 128))

    # Never exceed the 128-aligned pixel extent; the ragged tail becomes a
    # partial last block handled by Pallas edge masking.
    tp = min(tp, (P // 128) * 128)

    # Keep >=4 total grid steps when possible so v7x's two TensorCores both
    # get work under dimension_semantics=("parallel","parallel").
    min_steps = 4
    while N * (-(-P // tp)) < min_steps and tp > 128:
        tp = max(128, (tp // 2) // 128 * 128)
    return tp


def out_conv(x_nchw, weight, bias, *, tp=None):
    """1x1 conv (nn.Conv2d(in_channels, out_channels, kernel_size=1)).

    x_nchw: (N, Cin, H, W)
    weight: (Cout, Cin, 1, 1)   (PyTorch conv weight layout)
    bias:   (Cout,)
    returns (N, Cout, H, W), same dtype as x (bf16 in -> bf16 out; accumulate in f32).
    """
    N, Cin, H, W = x_nchw.shape
    Cout = weight.shape[0]
    P = H * W
    itemsize = jnp.dtype(x_nchw.dtype).itemsize

    # Free reshapes — no transpose, no extra HBM traffic.
    x3 = x_nchw.reshape(N, Cin, P)            # (N, Cin, P)
    w_mat = weight.reshape(Cout, Cin)          # (Cout, Cin)
    b_mat = bias.reshape(Cout, 1)              # (Cout, 1)

    if tp is None:
        tp = _pick_pixel_tile(P, N, Cin, Cout, itemsize)
    n_tiles = pl.cdiv(P, tp)

    # Explicit VMEM limit sized from the double-buffered tiles (+ slack):
    # raises v5e's 16 MiB default when tiles are big, never exceeds v7x's
    # 32 MiB default scope given the 24 MiB tile budget above.
    sub = _sublane(itemsize)
    pad = lambda c: -(-c // sub) * sub
    tile_bytes = 2 * (pad(Cin) + pad(Cout)) * tp * itemsize
    vmem_limit = int(max(16 << 20, min(tile_bytes + (8 << 20), 48 << 20)))

    cost = pl.CostEstimate(
        flops=2 * N * P * Cin * Cout,
        transcendentals=0,
        bytes_accessed=N * P * (Cin + Cout) * itemsize
        + (w_mat.size + b_mat.size) * jnp.dtype(weight.dtype).itemsize,
    )

    kernel = _make_outconv_kernel(Cin, use_vpu=(Cin <= 8))

    y3 = pl.pallas_call(
        kernel,
        out_shape=jax.ShapeDtypeStruct((N, Cout, P), x_nchw.dtype),
        grid_spec=pltpu.PrefetchScalarGridSpec(
            num_scalar_prefetch=0,
            grid=(N, n_tiles),
            in_specs=[
                pl.BlockSpec((Cout, Cin), lambda n, j: (0, 0)),          # weights
                pl.BlockSpec((Cout, 1), lambda n, j: (0, 0)),            # bias
                pl.BlockSpec((pl.Squeezed(), Cin, tp),
                             lambda n, j: (n, 0, j)),                    # pixel tile
            ],
            out_specs=pl.BlockSpec((pl.Squeezed(), Cout, tp),
                                   lambda n, j: (n, 0, j)),
        ),
        compiler_params=pltpu.CompilerParams(
            dimension_semantics=("parallel", "parallel"),
            vmem_limit_bytes=vmem_limit,
        ),
        cost_estimate=cost,
    )(w_mat, b_mat, x3)

    # (N, Cout, H*W) -> NCHW is a pure reshape.
    return y3.reshape(N, Cout, H, W)


if __name__ == "__main__":
    def ref_conv1x1(x, w, b):
        Cout, Cin = w.shape[0], w.shape[1]
        return (jnp.einsum("nchw,oc->nohw", x, w.reshape(Cout, Cin))
                + b[None, :, None, None])

    key = jax.random.PRNGKey(0)

    # Case 1: OutConv(4, 8), 128-aligned pixel count (VPU path).
    k1, k2, k3, key = jax.random.split(key, 4)
    x = jax.random.normal(k1, (2, 4, 16, 16), dtype=jnp.float32)
    w = jax.random.normal(k2, (8, 4, 1, 1), dtype=jnp.float32) * 0.1
    b = jax.random.normal(k3, (8,), dtype=jnp.float32) * 0.1
    y = out_conv(x, w, b)
    jax.block_until_ready(y)
    assert y.shape == (2, 8, 16, 16)
    assert jnp.allclose(y, ref_conv1x1(x, w, b), atol=1e-5, rtol=1e-5)

    # Case 2: non-128-aligned pixel count (P = 130) -> ragged last tile.
    k1, k2, k3, key = jax.random.split(key, 4)
    x = jax.random.normal(k1, (2, 4, 10, 13), dtype=jnp.float32)
    w = jax.random.normal(k2, (8, 4, 1, 1), dtype=jnp.float32) * 0.1
    b = jax.random.normal(k3, (8,), dtype=jnp.float32) * 0.1
    y = out_conv(x, w, b)
    jax.block_until_ready(y)
    assert jnp.allclose(y, ref_conv1x1(x, w, b), atol=1e-5, rtol=1e-5)

    # Case 3: wider channels (Cin = 16 > 8) -> MXU path, N = 1, ragged tail (P = 144).
    k1, k2, k3, key = jax.random.split(key, 4)
    x = jax.random.normal(k1, (1, 16, 12, 12), dtype=jnp.float32)
    w = jax.random.normal(k2, (3, 16, 1, 1), dtype=jnp.float32) * 0.1
    b = jax.random.normal(k3, (3,), dtype=jnp.float32) * 0.1
    y = out_conv(x, w, b)
    jax.block_until_ready(y)
    assert jnp.allclose(y, ref_conv1x1(x, w, b), atol=1e-5, rtol=1e-5)

    print("KERNEL_OK")
</pallas_src>

<mosaic_0001>
module attributes {stable_mosaic.version = 11 : i64} {
  func.func @kernel(%arg0: i32, %arg1: i32, %arg2: memref<8x4xf32, #tpu.memory_space<vmem>>, %arg3: memref<8x1xf32, #tpu.memory_space<vmem>>, %arg4: memref<1x4x128xf32, #tpu.memory_space<vmem>>, %arg5: memref<1x8x128xf32, #tpu.memory_space<vmem>>) attributes {dimension_semantics = [#tpu.dimension_semantics<parallel>, #tpu.dimension_semantics<parallel>], iteration_bounds = array<i64: 2, 2>, scalar_prefetch = 0 : i64, scratch_operands = 0 : i64, tpu.core_type = #tpu.core_type<tc>, window_params = [{pipeline_mode = #tpu.pipeline_mode<synchronous>, transform_indices = @transform_0, window_bounds = array<i64: 8, 4>}, {pipeline_mode = #tpu.pipeline_mode<synchronous>, transform_indices = @transform_1, window_bounds = array<i64: 8, 1>}, {transform_indices = @transform_2, window_bounds = array<i64: 1, 4, 128>}, {transform_indices = @transform_3, window_bounds = array<i64: 1, 8, 128>}]} {
    %c0 = arith.constant 0 : index
    %c0_0 = arith.constant 0 : index
    %c0_1 = arith.constant 0 : index
    %0 = vector.load %arg4[%c0, %c0_0, %c0_1] : memref<1x4x128xf32, #tpu.memory_space<vmem>>, vector<1x4x128xf32>
    %1 = vector.shape_cast %0 : vector<1x4x128xf32> to vector<4x128xf32>
    %c0_2 = arith.constant 0 : index
    %c0_3 = arith.constant 0 : index
    %2 = vector.load %arg2[%c0_2, %c0_3] : memref<8x4xf32, #tpu.memory_space<vmem>>, vector<8x4xf32>
    %3 = vector.extract_strided_slice %2 {offsets = [0, 0], sizes = [8, 1], strides = [1, 1]} : vector<8x4xf32> to vector<8x1xf32>
    %4 = vector.extract_strided_slice %1 {offsets = [0, 0], sizes = [1, 128], strides = [1, 1]} : vector<4x128xf32> to vector<1x128xf32>
    %5 = vector.broadcast %3 : vector<8x1xf32> to vector<8x128xf32>
    %6 = vector.broadcast %4 : vector<1x128xf32> to vector<8x128xf32>
    %7 = arith.mulf %5, %6 : vector<8x128xf32>
    %8 = vector.extract_strided_slice %2 {offsets = [0, 1], sizes = [8, 1], strides = [1, 1]} : vector<8x4xf32> to vector<8x1xf32>
    %9 = vector.extract_strided_slice %1 {offsets = [1, 0], sizes = [1, 128], strides = [1, 1]} : vector<4x128xf32> to vector<1x128xf32>
    %10 = vector.broadcast %8 : vector<8x1xf32> to vector<8x128xf32>
    %11 = vector.broadcast %9 : vector<1x128xf32> to vector<8x128xf32>
    %12 = arith.mulf %10, %11 : vector<8x128xf32>
    %13 = arith.addf %7, %12 : vector<8x128xf32>
    %14 = vector.extract_strided_slice %2 {offsets = [0, 2], sizes = [8, 1], strides = [1, 1]} : vector<8x4xf32> to vector<8x1xf32>
    %15 = vector.extract_strided_slice %1 {offsets = [2, 0], sizes = [1, 128], strides = [1, 1]} : vector<4x128xf32> to vector<1x128xf32>
    %16 = vector.broadcast %14 : vector<8x1xf32> to vector<8x128xf32>
    %17 = vector.broadcast %15 : vector<1x128xf32> to vector<8x128xf32>
    %18 = arith.mulf %16, %17 : vector<8x128xf32>
    %19 = arith.addf %13, %18 : vector<8x128xf32>
    %20 = vector.extract_strided_slice %2 {offsets = [0, 3], sizes = [8, 1], strides = [1, 1]} : vector<8x4xf32> to vector<8x1xf32>
    %21 = vector.extract_strided_slice %1 {offsets = [3, 0], sizes = [1, 128], strides = [1, 1]} : vector<4x128xf32> to vector<1x128xf32>
    %22 = vector.broadcast %20 : vector<8x1xf32> to vector<8x128xf32>
    %23 = vector.broadcast %21 : vector<1x128xf32> to vector<8x128xf32>
    %24 = arith.mulf %22, %23 : vector<8x128xf32>
    %25 = arith.addf %19, %24 : vector<8x128xf32>
    %c0_4 = arith.constant 0 : index
    %c0_5 = arith.constant 0 : index
    %26 = vector.load %arg3[%c0_4, %c0_5] : memref<8x1xf32, #tpu.memory_space<vmem>>, vector<8x1xf32>
    %27 = vector.broadcast %26 : vector<8x1xf32> to vector<8x128xf32>
    %28 = arith.addf %25, %27 : vector<8x128xf32>
    %c0_6 = arith.constant 0 : index
    %c0_7 = arith.constant 0 : index
    %c0_8 = arith.constant 0 : index
    %29 = vector.load %arg5[%c0_6, %c0_7, %c0_8] : memref<1x8x128xf32, #tpu.memory_space<vmem>>, vector<1x8x128xf32>
    %30 = vector.shape_cast %29 : vector<1x8x128xf32> to vector<8x128xf32>
    %31 = vector.shape_cast %28 : vector<8x128xf32> to vector<1x8x128xf32>
    tpu.vector_store %arg5[%c0_6, %c0_7, %c0_8], %31 {strides = array<i32>} : memref<1x8x128xf32, #tpu.memory_space<vmem>>, vector<1x8x128xf32>,
    return
  }
  func.func @transform_0(%arg0: i32, %arg1: i32) -> (i32, i32) {
    %c0_i32 = arith.constant 0 : i32
    %c0_i32_0 = arith.constant 0 : i32
    %c0_i32_1 = arith.constant 0 : i32
    return %c0_i32, %c0_i32_0 : i32, i32
  }
  func.func @transform_1(%arg0: i32, %arg1: i32) -> (i32, i32) {
    %c0_i32 = arith.constant 0 : i32
    %c0_i32_0 = arith.constant 0 : i32
    %c0_i32_1 = arith.constant 0 : i32
    return %c0_i32, %c0_i32_0 : i32, i32
  }
  func.func @transform_2(%arg0: i32, %arg1: i32) -> (i32, i32, i32) {
    %c0_i32 = arith.constant 0 : i32
    %c0_i32_0 = arith.constant 0 : i32
    return %arg0, %c0_i32, %arg1 : i32, i32, i32
  }
  func.func @transform_3(%arg0: i32, %arg1: i32) -> (i32, i32, i32) {
    %c0_i32 = arith.constant 0 : i32
    %c0_i32_0 = arith.constant 0 : i32
    return %arg0, %c0_i32, %arg1 : i32, i32, i32
  }
}

</mosaic_0001>

<llo_original>
// kernel: tpu_custom_call.1
$region0: #{tpu_custom_call.1}
  #allocation0 [shape = 'u32[]', space=smem, size = 0x4, offset = 0x4, fixed_abs, tag = 'smem constant byte address 0x4 - core index']
  #allocation1 [shape = 'u32[144,128]{1,0:T(1,128)}', space=vmem, size = 0x12000, scoped, tag = 'internal scratch']
  %s0 = inlined_call_operand.vmem [shape: f32[8,4], index: 0, kind: input, shape index: {}]
  %s1 = inlined_call_operand.vmem [shape: f32[8,1], index: 1, kind: input, shape index: {}]
  %s2 = inlined_call_operand.vmem [shape: f32[2,4,256], index: 2, kind: input, shape index: {}]
  %s3 = inlined_call_operand.hbm [shape: f32[2,8,256], index: 3, kind: output, shape index: {}]
  %s4 = sld [smem:[#allocation0]]
  $region45: #{tpu_custom_call.1} parent=0
    _
  %s6 = ssub.s32 1, %s4
  %s7 = scalar_select 0, %s6, %s4
  $region1: #{tpu_custom_call.1} parent=0
    #allocation2 [shape = 'u8[8192]{0}', space=vmem, size = 0x2000, scoped, tag = 'output window, operand 0']
    #allocation3 [shape = 's32[2]{0}', space=sflag, size = 0x8, scoped, tag = 'scoped memory for tpu_custom_call.1']
    %8 = vsyncpa [#allocation3], 0
    %s9 = scalar_lea.sflag [#allocation3], 1
    %10 = vsyncpa %s9, 0
    loop: start=0, step=1, limit=6
    $region2: #{tpu_custom_call.1} parent=1 // loop_pre_header
      _
    $region3: #{tpu_custom_call.1} parent=1 // loop_header
      %s12 = sphi 0, %s16
      %p13 = scmp.ge.s32.totalorder %s12, 6
      %s19 = sphi 0, %s31
      %s20 = sphi 0, %s27
      %s21 = sphi 0, %s19
      %s22 = sphi 0, %s20
      %s23 = sphi 0, %s21
      %s24 = sphi 0, %s22
      %s32 = sphi 0, %s32
      %s34 = sphi 0, %s32
      %s35 = sphi 0, %s34
      %s49 = sphi 0, %s35
      %s53 = sphi 0, %s53
      %s55 = sphi 0, %s53
      %s56 = sphi 0, %s55
      %s70 = sphi 0, %s56
      %s78 = sphi 0, %s80
      %s81 = sphi 0, %s78
      %s82 = sphi 0, %s81
      %s98 = sphi 0, %s82
      %s106 = sphi 0, %s108
      %s109 = sphi 0, %s106
      %s110 = sphi 0, %s109
      %s126 = sphi 0, %s110
    $region4: #{tpu_custom_call.1} parent=1 // loop_header_branch
      %15 = sbr.rel (%p13) target = $region8
    $region5: #{tpu_custom_call.1} parent=1 // loop_body
      %s17 = ssub.s32 %s12, 1
      %s18 = ssub.s32 %s12, 2
      %s25 = sadd.s32 1, %s20
      %p26 = scmp.ge.s32.totalorder %s25, 2
      %s27 = scalar_select %p26, 0, %s25
      %s28 = sadd.s32 1, %s19
      %s29 = scalar_select %p26, %s28, %s19
      %p30 = scmp.ge.s32.totalorder %s29, 2
      %s31 = scalar_select %p30, 0, %s29
      %s33 = sadd.s32 %s32, 1
      %p36 = scmp.eq.s32.totalorder %s12, 3
      %p37 = scmp.ne.s32.totalorder %s32, %s34
      %p38 = scmp.eq.s32.totalorder %s12, 0
      %p39 = por %p37, %p38
      %p40 = scmp.ne.s32.totalorder %s32, %s34
      %p41 = scmp.eq.s32.totalorder %s17, 3
      %p42 = por %p40, %p41
      %p43 = scmp.ne.s32.totalorder %s34, %s35
      %p44 = scmp.eq.s32.totalorder %s17, 0
      %p45 = por %p43, %p44
      %p46 = scmp.ne.s32.totalorder %s34, %s35
      %p47 = scmp.eq.s32.totalorder %s18, 3
      %p48 = por %p46, %p47
      %p50 = scmp.ne.s32.totalorder %s35, %s49
      %p51 = scmp.eq.s32.totalorder %s18, 0
      %p52 = por %p50, %p51
      %s54 = sadd.s32 %s53, 1
      %p57 = scmp.eq.s32.totalorder %s12, 3
      %p58 = scmp.ne.s32.totalorder %s53, %s55
      %p59 = scmp.eq.s32.totalorder %s12, 0
      %p60 = por %p58, %p59
      %p61 = scmp.ne.s32.totalorder %s53, %s55
      %p62 = scmp.eq.s32.totalorder %s17, 3
      %p63 = por %p61, %p62
      %p64 = scmp.ne.s32.totalorder %s55, %s56
      %p65 = scmp.eq.s32.totalorder %s17, 0
      %p66 = por %p64, %p65
      %p67 = scmp.ne.s32.totalorder %s55, %s56
      %p68 = scmp.eq.s32.totalorder %s18, 3
      %p69 = por %p67, %p68
      %p71 = scmp.ne.s32.totalorder %s56, %s70
      %p72 = scmp.eq.s32.totalorder %s18, 0
      %p73 = por %p71, %p72
      %s74 = ssub.s32 %s19, %s31
      %s75 = ssub.s32 %s20, %s27
      %s76 = sor.u32 %s74, %s75
      %p77 = scmp.eq.s32.totalorder %s76, 0
      %s79 = sadd.s32 %s78, 1
      %s80 = scalar_select %p77, %s78, %s79
      %p83 = pneg %p77
      %p84 = scmp.eq.s32.totalorder %s12, 3
      %p85 = por %p83, %p84
      %p86 = scmp.ne.s32.totalorder %s78, %s81
      %p87 = scmp.eq.s32.totalorder %s12, 0
      %p88 = por %p86, %p87
      %p89 = scmp.ne.s32.totalorder %s78, %s81
      %p90 = scmp.eq.s32.totalorder %s17, 3
      %p91 = por %p89, %p90
      %p92 = scmp.ne.s32.totalorder %s81, %s82
      %p93 = scmp.eq.s32.totalorder %s17, 0
      %p94 = por %p92, %p93
      %p95 = scmp.ne.s32.totalorder %s81, %s82
      %p96 = scmp.eq.s32.totalorder %s18, 3
      %p97 = por %p95, %p96
      %p99 = scmp.ne.s32.totalorder %s82, %s98
      %p100 = scmp.eq.s32.totalorder %s18, 0
      %p101 = por %p99, %p100
      %s102 = ssub.s32 %s19, %s31
      %s103 = ssub.s32 %s20, %s27
      %s104 = sor.u32 %s102, %s103
      %p105 = scmp.eq.s32.totalorder %s104, 0
      %s107 = sadd.s32 %s106, 1
      %s108 = scalar_select %p105, %s106, %s107
      %p111 = pneg %p105
      %p112 = scmp.eq.s32.totalorder %s12, 3
      %p113 = por %p111, %p112
      %p114 = scmp.ne.s32.totalorder %s106, %s109
      %p115 = scmp.eq.s32.totalorder %s12, 0
      %p116 = por %p114, %p115
      %p117 = scmp.ne.s32.totalorder %s106, %s109
      %p118 = scmp.eq.s32.totalorder %s17, 3
      %p119 = por %p117, %p118
      %p120 = scmp.ne.s32.totalorder %s109, %s110
      %p121 = scmp.eq.s32.totalorder %s17, 0
      %p122 = por %p120, %p121
      %p123 = scmp.ne.s32.totalorder %s109, %s110
      %p124 = scmp.eq.s32.totalorder %s18, 3
      %p125 = por %p123, %p124
      %p127 = scmp.ne.s32.totalorder %s110, %s126
      %p128 = scmp.eq.s32.totalorder %s18, 0
      %p129 = por %p127, %p128
      %p130 = scmp.le.s32.totalorder 1, %s12
      %p131 = scmp.lt.s32.totalorder %s12, 5
      %p132 = pnand %p130, %p131
      %p133 = pneg %p132
      // Predicated region
      $region9: #{tpu_custom_call.1} parent=5 // pred_check
        _
      $region10: #{tpu_custom_call.1} parent=5 // pred_check_branch
        %135 = sbr.rel (%p132) target = $region12
      $region11: #{tpu_custom_call.1} parent=5 // pred_region
        %s136 = ssub.s32 %s12, 1
        // Predicated region
        $region13: #{tpu_custom_call.1} parent=11 // pred_check
          %p137 = pneg %p45
        $region14: #{tpu_custom_call.1} parent=11 // pred_check_branch
          %139 = sbr.rel (%p137) target = $region16
        $region15: #{tpu_custom_call.1} parent=11 // pred_region
          _
        $region16: #{tpu_custom_call.1} parent=11 // pred_fallthru
          _
        // Predicated region
        $region17: #{tpu_custom_call.1} parent=11 // pred_check
          %p140 = pneg %p66
        $region18: #{tpu_custom_call.1} parent=11 // pred_check_branch
          %142 = sbr.rel (%p140) target = $region20
        $region19: #{tpu_custom_call.1} parent=11 // pred_region
          _
        $region20: #{tpu_custom_call.1} parent=11 // pred_fallthru
          _
      $region12: #{tpu_custom_call.1} parent=5 // pred_fallthru
        _
      %p143 = scmp.lt.s32.totalorder %s12, 4
      // Predicated region
      $region21: #{tpu_custom_call.1} parent=5 // pred_check
        %p144 = pneg %p143
      $region22: #{tpu_custom_call.1} parent=5 // pred_check_branch
        %146 = sbr.rel (%p144) target = $region24
      $region23: #{tpu_custom_call.1} parent=5 // pred_region
        // Predicated region
        $region25: #{tpu_custom_call.1} parent=23 // pred_check
          %p147 = pneg %p88
        $region26: #{tpu_custom_call.1} parent=23 // pred_check_branch
          %149 = sbr.rel (%p147) target = $region28
        $region27: #{tpu_custom_call.1} parent=23 // pred_region
          %p150 = scmp.lt.s32.totalorder %s19, 1
          %s151 = scalar_select %p150, %s19, 1
          %p152 = scmp.lt.s32.totalorder %s20, 1
          %s153 = scalar_select %p152, %s20, 1
          %s154 = smul.addr %s151, 2
          %s155 = sadd.s32 %s153, %s154
          %s156 = smul.addr %s155, 4
          %s157 = scalar_lea.vmem %s2, %s156
        $region28: #{tpu_custom_call.1} parent=23 // pred_fallthru
          _
      $region24: #{tpu_custom_call.1} parent=5 // pred_fallthru
        _
      %p158 = scmp.le.s32.totalorder 1, %s12
      %p159 = scmp.lt.s32.totalorder %s12, 5
      %p160 = pnand %p158, %p159
      %p161 = pneg %p160
      // Predicated region
      $region29: #{tpu_custom_call.1} parent=5 // pred_check
        _
      $region30: #{tpu_custom_call.1} parent=5 // pred_check_branch
        %163 = sbr.rel (%p160) target = $region32
      $region31: #{tpu_custom_call.1} parent=5 // pred_region
        %s164 = ssub.s32 %s12, 1
        %p165 = pneg %p45
        %p166 = pneg %p42
        %p167 = pneg %p66
        %p168 = pneg %p63
        %p169 = scmp.lt.s32.totalorder %s21, 1
        %s170 = scalar_select %p169, %s21, 1
        %p171 = scmp.lt.s32.totalorder %s22, 1
        %s172 = scalar_select %p171, %s22, 1
        %s173 = smul.addr %s170, 2
        %s174 = sadd.s32 %s172, %s173
        %s175 = smul.addr %s174, 4
        %s176 = scalar_lea.vmem %s2, %s175
        %p177 = pneg %p94
        %p178 = pneg %p91
        %p179 = pneg %p122
        %p180 = pneg %p119
        %s181 = sand.u32 %s109, 1
        %s182 = scalar_lea.sflag [#allocation3], %s181
        %s183 = sand.u32 %s109, 1
        %s184 = smul.addr %s183, 8
        %s185 = scalar_lea.vmem [#allocation2], %s184
        %p186 = scmp.lt.s32.totalorder %s21, 1
        %s187 = scalar_select %p186, %s21, 1
        %p188 = scmp.lt.s32.totalorder %s22, 1
        %s189 = scalar_select %p188, %s22, 1
        %s190 = smul.addr %s187, 2
        %s191 = sadd.s32 %s189, %s190
        %s192 = smul.addr %s191, 4
        %s193 = scalar_lea.vmem %s2, %s192
        %v194 = vld [vmem:[%s193] sm:$0xf]
        %v195 = vld [vmem:[%s0] sm:$0xff]
        %197 = vset.pattern.permute.xlu0 0
        %198 = vperm.xlu0 %197, %v195
        %v199 = vpop.permute.xlu0 %198
        %v201 = vlaneseq
        %v202 = vshrl.u32 %v201, 7
        %v203 = vsub.s32 0, %v202
        %v204 = vrot.slane %v194, %v203
        %v205 = vmul.f32 %v199, %v204
        %206 = vset.pattern.permute.xlu0 1
        %207 = vperm.xlu0 %206, %v195
        %v208 = vpop.permute.xlu0 %207
        %v210 = vlaneseq
        %v211 = vshrl.u32 %v210, 7
        %v212 = vsub.s32 1, %v211
        %v213 = vrot.slane %v194, %v212
        %v214 = vmul.f32 %v208, %v213
        %v215 = vadd.f32 %v205, %v214
        %216 = vset.pattern.permute.xlu0 2
        %217 = vperm.xlu0 %216, %v195
        %v218 = vpop.permute.xlu0 %217
        %v220 = vlaneseq
        %v221 = vshrl.u32 %v220, 7
        %v222 = vsub.s32 2, %v221
        %v223 = vrot.slane %v194, %v222
        %v224 = vmul.f32 %v218, %v223
        %v225 = vadd.f32 %v215, %v224
        %226 = vset.pattern.permute.xlu0 3
        %227 = vperm.xlu0 %226, %v195
        %v228 = vpop.permute.xlu0 %227
        %v230 = vlaneseq
        %v231 = vshrl.u32 %v230, 7
        %v232 = vsub.s32 3, %v231
        %v233 = vrot.slane %v194, %v232
        %v234 = vmul.f32 %v228, %v233
        %v235 = vadd.f32 %v225, %v234
        %v236 = vld [vmem:[%s1] sm:$0xff]
        %238 = vset.pattern.permute.xlu0 0
        %239 = vperm.xlu0 %238, %v236
        %v240 = vpop.permute.xlu0 %239
        %v242 = vadd.f32 %v235, %v240
        %243 = vst [vmem:[%s185] sm:$0xff] %v242
        %s244 = sand.u32 %s109, 1
        %s245 = scalar_lea.sflag [#allocation3], %s244
        %s246 = sand.u32 %s109, 1
        %s247 = smul.addr %s246, 8
        %s248 = scalar_lea.vmem [#allocation2], %s247
        // Predicated region
        $region33: #{tpu_custom_call.1} parent=31 // pred_check
          %p249 = pneg %p119
        $region34: #{tpu_custom_call.1} parent=31 // pred_check_branch
          %251 = sbr.rel (%p249) target = $region36
        $region35: #{tpu_custom_call.1} parent=31 // pred_region
          %s253 = ssub.s32 128, 128
          %254 = vsyncadd %s245, %s253
          %s255 = smul.addr %s21, 2
          %s256 = sadd.s32 %s22, %s255
          %s257 = smul.addr %s256, 128
          %s258 = scalar_lea.hbm %s3, %s257
          %s260 = sshll.u32 %s248, 4
          %s261 = int_to_ptr.vmem [resolvable:$true] %s260
          %263 = dma.vmem_to_hbm [thread:$0]  %s261, 128, %s258, %s245
        $region36: #{tpu_custom_call.1} parent=31 // pred_fallthru
          _
      $region32: #{tpu_custom_call.1} parent=5 // pred_fallthru
        _
      %p264 = scmp.le.s32.totalorder 2, %s12
      // Predicated region
      $region37: #{tpu_custom_call.1} parent=5 // pred_check
        %p265 = pneg %p264
      $region38: #{tpu_custom_call.1} parent=5 // pred_check_branch
        %267 = sbr.rel (%p265) target = $region40
      $region39: #{tpu_custom_call.1} parent=5 // pred_region
        %s268 = ssub.s32 %s12, 2
        // Predicated region
        $region41: #{tpu_custom_call.1} parent=39 // pred_check
          %p269 = pneg %p125
        $region42: #{tpu_custom_call.1} parent=39 // pred_check_branch
          %271 = sbr.rel (%p269) target = $region44
        $region43: #{tpu_custom_call.1} parent=39 // pred_region
          %s272 = sand.u32 %s110, 1
          %s273 = scalar_lea.sflag [#allocation3], %s272
          %s274 = sand.u32 %s110, 1
          %s275 = smul.addr %s274, 8
          %s276 = scalar_lea.vmem [#allocation2], %s275
          %277 = dma.done %s273, 128
        $region44: #{tpu_custom_call.1} parent=39 // pred_fallthru
          _
      $region40: #{tpu_custom_call.1} parent=5 // pred_fallthru
        _
    $region6: #{tpu_custom_call.1} parent=1 // loop_footer
      %s16 = sadd.s32 1, %s12
    $region7: #{tpu_custom_call.1} parent=1 // loop_footer_branch
      %11 = sbr.rel target = $region3
    $region8: #{tpu_custom_call.1} parent=1 // loop_exit
      _
    %278 = vsyncpa [#allocation3], 1
    %s279 = scalar_lea.sflag [#allocation3], 1
    %280 = vsyncpa %s279, 1

</llo_original>
